<compile_context>
chip_gen: v5e
topology: v5e:2x2
jax: 0.10.0
libtpu: 0.0.40
codegen_flags: <defaults>
</compile_context>

<pallas_src>
import functools
import math

import jax
import jax.numpy as jnp
from jax.experimental import pallas as pl
from jax.experimental.pallas import tpu as pltpu

LANES = 128
SUBLANES = 8
ROW_ALIGN = 32                     # keeps bf16/int8 sublane-packed layouts
CHUNK_R = 512                      # 512*128*4B = 256 KiB f32 temps per chunk
BLOCK_R_MAX = 8192                 # 8192*128*4B = 4 MiB f32 per input block
VMEM_LIMIT_BYTES = 48 * 1024 * 1024  # 2 in x 2 buf x 4 MiB = 16 MiB + headroom


def _round_up(x, m):
    return ((x + m - 1) // m) * m


def _num_tensorcores():
    """2 on dual-TensorCore chips (v7x); 1 otherwise or if undetectable."""
    try:
        dev = jax.devices()[0]
        if dev.platform != "tpu":
            return 1
        kind = str(getattr(dev, "device_kind", "")).lower()
        if "v7" in kind:
            return 2
    except Exception:
        pass
    return 1


def _softiou_kernel(x_ref, t_ref, acc_ref, *, block_r, chunk_r):
    """Accumulate (intersection, sum(p|mask), sum(t|mask)) vreg partials.

    The wrapper pads inputs so every block is fully valid (target pad is zero,
    hence mask-neutral): no per-element validity mask is needed here.
    """
    i = pl.program_id(1)  # reduction ("arbitrary") axis

    @pl.when(i == 0)
    def _():
        acc_ref[...] = jnp.zeros_like(acc_ref)

    n_chunks = block_r // chunk_r

    def fold(v):
        # (chunk_r, 128) -> (8, 128): tile-aligned reshape + pure VPU adds.
        return v.reshape(chunk_r // SUBLANES, SUBLANES, LANES).sum(axis=0)

    def body(s, carry):
        inter, psum, tsum = carry
        off = pl.multiple_of(s * chunk_r, chunk_r)
        x = x_ref[pl.ds(off, chunk_r), :].astype(jnp.float32)
        t = t_ref[pl.ds(off, chunk_r), :].astype(jnp.float32)
        # sigmoid(x) == 0.5*(tanh(x/2)+1): transcendental stays on the EUP
        # slot, no full-precision divide on the VALU.
        probs = 0.5 * (jnp.tanh(0.5 * x) + 1.0)
        mask = t > 0.0
        pm = jnp.where(mask, probs, 0.0)
        tm = jnp.where(mask, t, 0.0)
        return (inter + fold(pm * tm), psum + fold(pm), tsum + fold(tm))

    zero = jnp.zeros((SUBLANES, LANES), jnp.float32)
    inter, psum, tsum = jax.lax.fori_loop(
        0, n_chunks, body, (zero, zero, zero), unroll=True
    )
    acc_ref[0, 0] += inter   # intersection
    acc_ref[0, 1] += psum    # sum(probs | mask)
    acc_ref[0, 2] += tsum    # sum(targets | mask)


@functools.partial(jax.jit, static_argnames=("eps",))
def soft_iou_loss(inputs, targets, eps=1e-6):
    n = int(math.prod(inputs.shape))
    rows_min = -(-n // LANES)  # ceil(n / 128)

    if rows_min <= BLOCK_R_MAX:
        # Single block, single core, one grid step.
        num_cores = 1
        align = ROW_ALIGN if rows_min <= CHUNK_R else CHUNK_R
        block_r = _round_up(rows_min, align)
        bpc = 1
    else:
        # Stream 4 MiB blocks; pad so the grid tiles the rows exactly.
        num_cores = _num_tensorcores()
        block_r = BLOCK_R_MAX
        total_blocks = _round_up(-(-rows_min // block_r), num_cores)
        bpc = total_blocks // num_cores

    rows = block_r * bpc * num_cores
    chunk_r = CHUNK_R if (block_r >= CHUNK_R and block_r % CHUNK_R == 0) else block_r

    def as_rows(a):
        flat = a.reshape(-1)
        pad = rows * LANES - flat.shape[0]
        if pad:  # trace-time branch; zero targets are mask-neutral
            flat = jnp.pad(flat, (0, pad))
        return flat.reshape(rows, LANES)

    x2d = as_rows(inputs)   # native dtype; upcast happens per-chunk in-kernel
    t2d = as_rows(targets)

    in_map = lambda c, i: (c * bpc + i, 0)
    kernel = functools.partial(_softiou_kernel, block_r=block_r, chunk_r=chunk_r)

    partials = pl.pallas_call(
        kernel,
        out_shape=jax.ShapeDtypeStruct(
            (num_cores, 3, SUBLANES, LANES), jnp.float32
        ),
        grid=(num_cores, bpc),
        in_specs=[
            pl.BlockSpec((block_r, LANES), in_map),
            pl.BlockSpec((block_r, LANES), in_map),
        ],
        # Same block across the reduction axis -> VMEM-resident accumulator;
        # distinct block per core along the parallel axis -> no races.
        out_specs=pl.BlockSpec(
            (1, 3, SUBLANES, LANES), lambda c, i: (c, 0, 0, 0)
        ),
        compiler_params=pltpu.CompilerParams(
            dimension_semantics=("parallel", "arbitrary"),
            vmem_limit_bytes=VMEM_LIMIT_BYTES,
        ),
    )(x2d, t2d)

    # Tiny XLA epilogue: single cross-lane collapse of (nc, 3, 8, 128) -> (3,).
    sums = jnp.sum(partials, axis=(0, 2, 3))
    intersection = sums[0]
    union = sums[1] + sums[2] - intersection
    iou = (intersection + eps) / (union + eps)
    return 1.0 - iou


def _reference(inputs, targets, eps=1e-6):
    probs = jax.nn.sigmoid(inputs.astype(jnp.float32)).reshape(-1)
    t = targets.astype(jnp.float32).reshape(-1)
    mask = t > 0.0
    pm = jnp.where(mask, probs, 0.0)
    tm = jnp.where(mask, t, 0.0)
    inter = jnp.sum(pm * tm)
    union = jnp.sum(pm) + jnp.sum(tm) - inter
    return 1.0 - (inter + eps) / (union + eps)


if __name__ == "__main__":
    key = jax.random.PRNGKey(0)
    k1, k2 = jax.random.split(key)
    # NCHW-shaped logits and binary targets (B=2, C=4, H=W=16)
    inputs = jax.random.normal(k1, (2, 4, 16, 16), dtype=jnp.float32)
    targets = (jax.random.uniform(k2, (2, 4, 16, 16)) > 0.5).astype(jnp.float32)

    loss = soft_iou_loss(inputs, targets)
    jax.block_until_ready(loss)

    ref = _reference(inputs, targets)
    assert jnp.allclose(loss, ref, rtol=1e-5, atol=1e-6), (loss, ref)

    print("KERNEL_OK")
</pallas_src>

<mosaic_0001>
module attributes {stable_mosaic.version = 11 : i64} {
  func.func @_softiou_kernel(%arg0: i32, %arg1: i32, %arg2: memref<32x128xf32, #tpu.memory_space<vmem>>, %arg3: memref<32x128xf32, #tpu.memory_space<vmem>>, %arg4: memref<1x3x8x128xf32, #tpu.memory_space<vmem>>) attributes {dimension_semantics = [#tpu.dimension_semantics<parallel>, #tpu.dimension_semantics<arbitrary>], iteration_bounds = array<i64: 1, 1>, scalar_prefetch = 0 : i64, scratch_operands = 0 : i64, tpu.core_type = #tpu.core_type<tc>, window_params = [{transform_indices = @transform_0, window_bounds = array<i64: 32, 128>}, {transform_indices = @transform_1, window_bounds = array<i64: 32, 128>}, {transform_indices = @transform_2, window_bounds = array<i64: 1, 3, 8, 128>}]} {
    %c0_i32 = arith.constant 0 : i32
    %0 = arith.cmpi eq, %arg1, %c0_i32 : i32
    %1 = arith.extui %0 : i1 to i32
    %c0_i32_0 = arith.constant 0 : i32
    %2 = arith.cmpi ne, %1, %c0_i32_0 : i32
    scf.if %2 {
      %cst_34 = arith.constant 0.000000e+00 : f32
      %51 = vector.broadcast %cst_34 : f32 to vector<1x3x8x128xf32>
      %c0_35 = arith.constant 0 : index
      %c0_36 = arith.constant 0 : index
      %c0_37 = arith.constant 0 : index
      %c0_38 = arith.constant 0 : index
      %52 = vector.load %arg4[%c0_35, %c0_36, %c0_37, %c0_38] : memref<1x3x8x128xf32, #tpu.memory_space<vmem>>, vector<1x3x8x128xf32>
      tpu.vector_store %arg4[%c0_35, %c0_36, %c0_37, %c0_38], %51 {strides = array<i32>} : memref<1x3x8x128xf32, #tpu.memory_space<vmem>>, vector<1x3x8x128xf32>,
    } else {
    }
    %cst = arith.constant 0.000000e+00 : f32
    %3 = vector.broadcast %cst : f32 to vector<8x128xf32>
    %c0_i32_1 = arith.constant 0 : i32
    %c32_i32 = arith.constant 32 : i32
    %4 = arith.muli %c0_i32_1, %c32_i32 : i32
    %5 = tpu.assume_multiple %4, 32 : i32
    %6 = arith.index_cast %5 : i32 to index
    %c0 = arith.constant 0 : index
    %7 = vector.load %arg2[%6, %c0] : memref<32x128xf32, #tpu.memory_space<vmem>>, vector<32x128xf32>
    %8 = arith.index_cast %5 : i32 to index
    %c0_2 = arith.constant 0 : index
    %9 = vector.load %arg3[%8, %c0_2] : memref<32x128xf32, #tpu.memory_space<vmem>>, vector<32x128xf32>
    %cst_3 = arith.constant 5.000000e-01 : f32
    %10 = vector.broadcast %cst_3 : f32 to vector<32x128xf32>
    %11 = arith.mulf %10, %7 : vector<32x128xf32>
    %12 = math.tanh %11 : vector<32x128xf32>
    %cst_4 = arith.constant 1.000000e+00 : f32
    %13 = vector.broadcast %cst_4 : f32 to vector<32x128xf32>
    %14 = arith.addf %12, %13 : vector<32x128xf32>
    %cst_5 = arith.constant 5.000000e-01 : f32
    %15 = vector.broadcast %cst_5 : f32 to vector<32x128xf32>
    %16 = arith.mulf %15, %14 : vector<32x128xf32>
    %cst_6 = arith.constant 0.000000e+00 : f32
    %17 = vector.broadcast %cst_6 : f32 to vector<32x128xf32>
    %18 = arith.cmpf ogt, %9, %17 : vector<32x128xf32>
    %cst_7 = arith.constant 0.000000e+00 : f32
    %19 = vector.broadcast %cst_7 : f32 to vector<32x128xf32>
    %20 = arith.select %18, %16, %19 : vector<32x128xi1>, vector<32x128xf32>
    %cst_8 = arith.constant 0.000000e+00 : f32
    %21 = vector.broadcast %cst_8 : f32 to vector<32x128xf32>
    %22 = arith.select %18, %9, %21 : vector<32x128xi1>, vector<32x128xf32>
    %23 = arith.mulf %20, %22 : vector<32x128xf32>
    %24 = vector.shape_cast %23 : vector<32x128xf32> to vector<4x8x128xf32>
    %cst_9 = arith.constant dense<0.000000e+00> : vector<8x128xf32>
    %25 = vector.multi_reduction <add>, %24, %cst_9 [0] : vector<4x8x128xf32> to vector<8x128xf32>
    %26 = arith.addf %3, %25 : vector<8x128xf32>
    %27 = vector.shape_cast %20 : vector<32x128xf32> to vector<4x8x128xf32>
    %cst_10 = arith.constant dense<0.000000e+00> : vector<8x128xf32>
    %28 = vector.multi_reduction <add>, %27, %cst_10 [0] : vector<4x8x128xf32> to vector<8x128xf32>
    %29 = arith.addf %3, %28 : vector<8x128xf32>
    %30 = vector.shape_cast %22 : vector<32x128xf32> to vector<4x8x128xf32>
    %cst_11 = arith.constant dense<0.000000e+00> : vector<8x128xf32>
    %31 = vector.multi_reduction <add>, %30, %cst_11 [0] : vector<4x8x128xf32> to vector<8x128xf32>
    %32 = arith.addf %3, %31 : vector<8x128xf32>
    %c1_i32 = arith.constant 1 : i32
    %c0_12 = arith.constant 0 : index
    %c0_13 = arith.constant 0 : index
    %c0_14 = arith.constant 0 : index
    %c0_15 = arith.constant 0 : index
    %33 = vector.load %arg4[%c0_12, %c0_13, %c0_14, %c0_15] : memref<1x3x8x128xf32, #tpu.memory_space<vmem>>, vector<1x1x8x128xf32>
    %34 = vector.shape_cast %33 : vector<1x1x8x128xf32> to vector<8x128xf32>
    %35 = arith.addf %34, %26 : vector<8x128xf32>
    %c0_16 = arith.constant 0 : index
    %c0_17 = arith.constant 0 : index
    %c0_18 = arith.constant 0 : index
    %c0_19 = arith.constant 0 : index
    %36 = vector.load %arg4[%c0_16, %c0_17, %c0_18, %c0_19] : memref<1x3x8x128xf32, #tpu.memory_space<vmem>>, vector<1x1x8x128xf32>
    %37 = vector.shape_cast %36 : vector<1x1x8x128xf32> to vector<8x128xf32>
    %38 = vector.shape_cast %35 : vector<8x128xf32> to vector<1x1x8x128xf32>
    tpu.vector_store %arg4[%c0_16, %c0_17, %c0_18, %c0_19], %38 {strides = array<i32>} : memref<1x3x8x128xf32, #tpu.memory_space<vmem>>, vector<1x1x8x128xf32>,
    %c0_20 = arith.constant 0 : index
    %c1 = arith.constant 1 : index
    %c0_21 = arith.constant 0 : index
    %c0_22 = arith.constant 0 : index
    %39 = vector.load %arg4[%c0_20, %c1, %c0_21, %c0_22] : memref<1x3x8x128xf32, #tpu.memory_space<vmem>>, vector<1x1x8x128xf32>
    %40 = vector.shape_cast %39 : vector<1x1x8x128xf32> to vector<8x128xf32>
    %41 = arith.addf %40, %29 : vector<8x128xf32>
    %c0_23 = arith.constant 0 : index
    %c1_24 = arith.constant 1 : index
    %c0_25 = arith.constant 0 : index
    %c0_26 = arith.constant 0 : index
    %42 = vector.load %arg4[%c0_23, %c1_24, %c0_25, %c0_26] : memref<1x3x8x128xf32, #tpu.memory_space<vmem>>, vector<1x1x8x128xf32>
    %43 = vector.shape_cast %42 : vector<1x1x8x128xf32> to vector<8x128xf32>
    %44 = vector.shape_cast %41 : vector<8x128xf32> to vector<1x1x8x128xf32>
    tpu.vector_store %arg4[%c0_23, %c1_24, %c0_25, %c0_26], %44 {strides = array<i32>} : memref<1x3x8x128xf32, #tpu.memory_space<vmem>>, vector<1x1x8x128xf32>,
    %c0_27 = arith.constant 0 : index
    %c2 = arith.constant 2 : index
    %c0_28 = arith.constant 0 : index
    %c0_29 = arith.constant 0 : index
    %45 = vector.load %arg4[%c0_27, %c2, %c0_28, %c0_29] : memref<1x3x8x128xf32, #tpu.memory_space<vmem>>, vector<1x1x8x128xf32>
    %46 = vector.shape_cast %45 : vector<1x1x8x128xf32> to vector<8x128xf32>
    %47 = arith.addf %46, %32 : vector<8x128xf32>
    %c0_30 = arith.constant 0 : index
    %c2_31 = arith.constant 2 : index
    %c0_32 = arith.constant 0 : index
    %c0_33 = arith.constant 0 : index
    %48 = vector.load %arg4[%c0_30, %c2_31, %c0_32, %c0_33] : memref<1x3x8x128xf32, #tpu.memory_space<vmem>>, vector<1x1x8x128xf32>
    %49 = vector.shape_cast %48 : vector<1x1x8x128xf32> to vector<8x128xf32>
    %50 = vector.shape_cast %47 : vector<8x128xf32> to vector<1x1x8x128xf32>
    tpu.vector_store %arg4[%c0_30, %c2_31, %c0_32, %c0_33], %50 {strides = array<i32>} : memref<1x3x8x128xf32, #tpu.memory_space<vmem>>, vector<1x1x8x128xf32>,
    return
  }
  func.func @transform_0(%arg0: i32, %arg1: i32) -> (i32, i32) {
    %c1_i32 = arith.constant 1 : i32
    %0 = arith.muli %arg0, %c1_i32 : i32
    %1 = arith.addi %0, %arg1 : i32
    %c0_i32 = arith.constant 0 : i32
    %c0_i32_0 = arith.constant 0 : i32
    return %1, %c0_i32 : i32, i32
  }
  func.func @transform_1(%arg0: i32, %arg1: i32) -> (i32, i32) {
    %c1_i32 = arith.constant 1 : i32
    %0 = arith.muli %arg0, %c1_i32 : i32
    %1 = arith.addi %0, %arg1 : i32
    %c0_i32 = arith.constant 0 : i32
    %c0_i32_0 = arith.constant 0 : i32
    return %1, %c0_i32 : i32, i32
  }
  func.func @transform_2(%arg0: i32, %arg1: i32) -> (i32, i32, i32, i32) {
    %c0_i32 = arith.constant 0 : i32
    %c0_i32_0 = arith.constant 0 : i32
    %c0_i32_1 = arith.constant 0 : i32
    %c0_i32_2 = arith.constant 0 : i32
    return %arg0, %c0_i32, %c0_i32_0, %c0_i32_1 : i32, i32, i32, i32
  }
}

</mosaic_0001>

<llo_original>
// kernel: soft_iou_loss.1
$region0: #{soft_iou_loss.1}
  #allocation0 [shape = 'u32[]', space=smem, size = 0x4, offset = 0x4, fixed_abs, tag = 'smem constant byte address 0x4 - core index']
  #allocation1 [shape = 'u32[72,128]{1,0:T(1,128)}', space=vmem, size = 0x9000, scoped, tag = 'internal scratch']
  %s0 = inlined_call_operand.vmem [shape: f32[32,128], index: 0, kind: input, shape index: {}]
  %s1 = inlined_call_operand.vmem [shape: f32[32,128], index: 1, kind: input, shape index: {}]
  %s2 = inlined_call_operand.vmem [shape: f32[1,3,8,128], index: 2, kind: output, shape index: {}]
  %s3 = sld [smem:[#allocation0]]
  $region22: #{soft_iou_loss.1} parent=0
    _
  %s5 = ssub.s32 1, %s3
  %s6 = scalar_select 0, %s5, %s3
  // Predicated region
  $region2: #{soft_iou_loss.1} parent=0 // pred_check
    _
  $region3: #{soft_iou_loss.1} parent=0 // pred_check_branch
    %8 = sbr.rel (0) target = $region5
  $region4: #{soft_iou_loss.1} parent=0 // pred_region
    %s9 = sadd.s32 0, 0
    %s10 = smul.u32 4, %s9
    %p11 = scmp.lt.s32.totalorder %s10, 3
    %s12 = scalar_select %p11, %s10, 3
    %s13 = smul.addr %s12, 8
    %s14 = scalar_lea.vmem %s0, %s13
    %s15 = sadd.s32 0, 0
    %s16 = smul.u32 4, %s15
  $region5: #{soft_iou_loss.1} parent=0 // pred_fallthru
    _
  // Predicated region
  $region6: #{soft_iou_loss.1} parent=0 // pred_check
    _
  $region7: #{soft_iou_loss.1} parent=0 // pred_check_branch
    %18 = sbr.rel (0) target = $region9
  $region8: #{soft_iou_loss.1} parent=0 // pred_region
    %s19 = sadd.s32 0, 0
    %s20 = smul.u32 4, %s19
    %p21 = scmp.lt.s32.totalorder %s20, 3
    %s22 = scalar_select %p21, %s20, 3
    %s23 = smul.addr %s22, 8
    %s24 = scalar_lea.vmem %s1, %s23
    %s25 = sadd.s32 0, 0
    %s26 = smul.u32 4, %s25
  $region9: #{soft_iou_loss.1} parent=0 // pred_fallthru
    _
  %s27 = sadd.s32 0, 0
  %s28 = smul.u32 4, %s27
  %p29 = scmp.lt.s32.totalorder %s28, 3
  %s30 = scalar_select %p29, %s28, 3
  %s31 = smul.addr %s30, 8
  %s32 = scalar_lea.vmem %s0, %s31
  %s33 = sadd.s32 0, 0
  %s34 = smul.u32 4, %s33
  %p35 = scmp.lt.s32.totalorder %s34, 3
  %s36 = scalar_select %p35, %s34, 3
  %s37 = smul.addr %s36, 8
  %s38 = scalar_lea.vmem %s1, %s37
  %s39 = sadd.s32 0, 0
  %s40 = smul.u32 4, %s39
  %p41 = scmp.lt.s32.totalorder %s40, 3
  %s42 = scalar_select %p41, %s40, 3
  %s43 = smul.addr %s42, 8
  %s44 = scalar_lea.vmem %s0, %s43
  %s45 = sadd.s32 0, 0
  %s46 = smul.u32 4, %s45
  %s47 = sadd.s32 0, 0
  %s48 = smul.u32 4, %s47
  %p49 = scmp.lt.s32.totalorder %s48, 3
  %s50 = scalar_select %p49, %s48, 3
  %s51 = smul.addr %s50, 8
  %s52 = scalar_lea.vmem %s1, %s51
  %s53 = sadd.s32 0, 0
  %s54 = smul.u32 4, %s53
  %p55 = scmp.eq.s32.totalorder 0, 0
  // Predicated region
  $region10: #{soft_iou_loss.1} parent=0 // pred_check
    %p56 = pneg %p55
  $region11: #{soft_iou_loss.1} parent=0 // pred_check_branch
    %58 = sbr.rel (%p56) target = $region13
  $region12: #{soft_iou_loss.1} parent=0 // pred_region
    %59 = vst [vmem:[%s2] sm:$0xff] 0.0
    %60 = vst [vmem:[%s2 + $0x8] sm:$0xff] 0.0
    %61 = vst [vmem:[%s2 + $0x10] sm:$0xff] 0.0
  $region13: #{soft_iou_loss.1} parent=0 // pred_fallthru
    _
  %v62 = vld [vmem:[%s44] sm:$0xff]
  %v63 = vld [vmem:[%s44 + $0x8] sm:$0xff]
  %v64 = vld [vmem:[%s44 + $0x10] sm:$0xff]
  %v65 = vld [vmem:[%s44 + $0x18] sm:$0xff]
  %v66 = vld [vmem:[%s52] sm:$0xff]
  %v67 = vld [vmem:[%s52 + $0x8] sm:$0xff]
  %v68 = vld [vmem:[%s52 + $0x10] sm:$0xff]
  %v69 = vld [vmem:[%s52 + $0x18] sm:$0xff]
  %v70 = vmul.f32 %v62, 0.5
  %v71 = vmul.f32 %v63, 0.5
  %v72 = vmul.f32 %v64, 0.5
  %v73 = vmul.f32 %v65, 0.5
  %v74 = vtanh.pop %v70
  %v75 = vtanh.pop %v71
  %v76 = vtanh.pop %v72
  %v77 = vtanh.pop %v73
  %v78 = vadd.f32 %v74, 1.0
  %v79 = vadd.f32 %v75, 1.0
  %v80 = vadd.f32 %v76, 1.0
  %v81 = vadd.f32 %v77, 1.0
  %v82 = vmul.f32 %v78, 0.5
  %v83 = vmul.f32 %v79, 0.5
  %v84 = vmul.f32 %v80, 0.5
  %v85 = vmul.f32 %v81, 0.5
  %vm86 = vcmp.gt.f32.partialorder %v66, 0.0
  %vm87 = vcmp.gt.f32.partialorder %v67, 0.0
  %vm88 = vcmp.gt.f32.partialorder %v68, 0.0
  %vm89 = vcmp.gt.f32.partialorder %v69, 0.0
  %v90 = vsel %vm86, %v82, 0.0
  %v91 = vsel %vm87, %v83, 0.0
  %v92 = vsel %vm88, %v84, 0.0
  %v93 = vsel %vm89, %v85, 0.0
  %v94 = vsel %vm86, %v66, 0.0
  %v95 = vsel %vm87, %v67, 0.0
  %v96 = vsel %vm88, %v68, 0.0
  %v97 = vsel %vm89, %v69, 0.0
  %v98 = vmul.f32 %v90, %v94
  %v99 = vmul.f32 %v91, %v95
  %v100 = vmul.f32 %v92, %v96
  %v101 = vmul.f32 %v93, %v97
  %v102 = vadd.f32 %v98, %v99
  %v103 = vadd.f32 %v102, %v100
  %v104 = vadd.f32 %v103, %v101
  %v105 = vadd.f32 %v104, 0.0
  %v106 = vadd.f32 %v90, %v91
  %v107 = vadd.f32 %v106, %v92
  %v108 = vadd.f32 %v107, %v93
  %v109 = vadd.f32 %v108, 0.0
  %v110 = vadd.f32 %v94, %v95
  %v111 = vadd.f32 %v110, %v96
  %v112 = vadd.f32 %v111, %v97
  %v113 = vadd.f32 %v112, 0.0
  %v114 = vld [vmem:[%s2] sm:$0xff]
  %v115 = vadd.f32 %v114, %v105
  %116 = vst [vmem:[%s2] sm:$0xff] %v115
  %s117 = scalar_lea.vmem %s2, 8
  %v118 = vld [vmem:[%s117] sm:$0xff]
  %v119 = vadd.f32 %v118, %v109
  %120 = vst [vmem:[%s117] sm:$0xff] %v119
  %s121 = scalar_lea.vmem %s2, 16
  %v122 = vld [vmem:[%s121] sm:$0xff]
  %v123 = vadd.f32 %v122, %v113
  %124 = vst [vmem:[%s121] sm:$0xff] %v123
  // Predicated region
  $region14: #{soft_iou_loss.1} parent=0 // pred_check
    _
  $region15: #{soft_iou_loss.1} parent=0 // pred_check_branch
    %126 = sbr.rel (0) target = $region17
  $region16: #{soft_iou_loss.1} parent=0 // pred_region
    _
  $region17: #{soft_iou_loss.1} parent=0 // pred_fallthru
    _
  // Predicated region
  $region18: #{soft_iou_loss.1} parent=0 // pred_check
    _
  $region19: #{soft_iou_loss.1} parent=0 // pred_check_branch
    %128 = sbr.rel (0) target = $region21
  $region20: #{soft_iou_loss.1} parent=0 // pred_region
    _
  $region21: #{soft_iou_loss.1} parent=0 // pred_fallthru
    _

</llo_original>
